<compile_context>
chip_gen: v7x
topology: tpu7x:2x2x1
jax: 0.10.0
libtpu: 0.0.40
codegen_flags: <defaults>
</compile_context>

<pallas_src>
import jax
import jax.numpy as jnp
from jax.experimental import pallas as pl
from jax.experimental.pallas import tpu as pltpu


def _round_up(x, m):
    return ((x + m - 1) // m) * m


def ca_net_kernel(x_ref, w_ref, b_ref, eps_ref, out_ref):
    """One batch tile: fused N=2*c_pad matmul, relu, reparametrize, lane-dense store."""
    c_pad = w_ref.shape[1] // 2

    # Single MXU dot (bf16 inputs, f32 accumulation), then f32 bias + relu (VPU).
    h = jnp.dot(x_ref[...], w_ref[...], preferred_element_type=jnp.float32)   # [TB, 2*c_pad]
    h = jnp.maximum(h + b_ref[...], 0.0)

    # 128-aligned post-dot column split (no XLU shuffles).
    mu = h[:, :c_pad]
    lv = h[:, c_pad:]

    # reparametrize: std = exp(0.5 * logvar); c_code = eps * std + mu  (EUP exp, f32)
    std = jnp.exp(0.5 * lv)
    c_code = eps_ref[...].astype(jnp.float32) * std + mu

    # Lane-dense packed output [TB, 3*c_pad]: (c_code | mu | logvar), stores at
    # 128-aligned column offsets -> unmasked vst, single HBM writeback stream.
    out_ref[:, 0 * c_pad:1 * c_pad] = c_code.astype(out_ref.dtype)
    out_ref[:, 1 * c_pad:2 * c_pad] = mu.astype(out_ref.dtype)
    out_ref[:, 2 * c_pad:3 * c_pad] = lv.astype(out_ref.dtype)


def prepare_ca_net_params(fc_weight, fc_bias, compute_dtype=jnp.bfloat16):
    """One-time layout plumbing (do this at parameter-load time, NOT per call).

    fc_weight: [2*c_dim, text_dim] (PyTorch nn.Linear layout), fc_bias: [2*c_dim].

    Returns:
      w_packed [text_dim, 2*c_pad] (compute_dtype): columns [0:c_dim]=W_mu^T,
               [c_pad:c_pad+c_dim]=W_logvar^T, zero-padded to c_pad=round_up(c_dim,128).
      b_packed [1, 2*c_pad] (float32): biases laid out the same way.
      c_dim, c_pad.
    """
    two_c, text_dim = fc_weight.shape
    c_dim = two_c // 2
    c_pad = _round_up(c_dim, 128)

    w_t = jnp.asarray(fc_weight, jnp.float32).T                 # [text_dim, 2*c_dim]
    w_packed = jnp.zeros((text_dim, 2 * c_pad), jnp.float32)
    w_packed = w_packed.at[:, :c_dim].set(w_t[:, :c_dim])
    w_packed = w_packed.at[:, c_pad:c_pad + c_dim].set(w_t[:, c_dim:])
    w_packed = w_packed.astype(compute_dtype)

    b = jnp.asarray(fc_bias, jnp.float32)
    b_packed = jnp.zeros((1, 2 * c_pad), jnp.float32)
    b_packed = b_packed.at[:, :c_dim].set(b[:c_dim])
    b_packed = b_packed.at[:, c_pad:c_pad + c_dim].set(b[c_dim:])
    return w_packed, b_packed, c_dim, c_pad


def ca_net_forward(text_embedding, w_packed, b_packed, eps, c_dim,
                   *, tb=None, out_dtype=jnp.float32):
    """text_embedding: [B, text_dim]; w_packed: [text_dim, 2*c_pad]; b_packed: [1, 2*c_pad];
    eps: [B, c_dim] (or [B, c_pad]). Returns (c_code, mu, logvar), each [B, c_dim].

    out_dtype can be set to jnp.bfloat16 if downstream consumers take bf16
    (halves the output writeback)."""
    B, text_dim = text_embedding.shape
    c_pad = w_packed.shape[1] // 2

    # Cast the x stream to the weight compute dtype (ideally the producer of
    # text_embedding already emits this dtype).
    x = text_embedding.astype(w_packed.dtype)

    # eps column-pad only when c_dim is not 128-aligned (tiny copy; production
    # NEF=128 skips it).  Padded lanes see logvar=0 -> std=1, eps=0 -> c_code=0.
    if eps.shape[1] != c_pad:
        eps = jnp.pad(eps, ((0, 0), (0, c_pad - eps.shape[1])))
    eps = eps.astype(jnp.float32)

    # Batch tile: >=2 grid steps for B >= 16 (megacore sharding + DMA overlap),
    # capped at 512 rows (VMEM-safe at realistic text_dim on v5e/v6e/v7x).
    if tb is None:
        tb = max(8, min(512, _round_up(pl.cdiv(B, 2), 8)))
        tb = min(tb, _round_up(B, 8))
    grid = (pl.cdiv(B, tb),)   # ragged last block: OOB rows discarded on write

    cost = pl.CostEstimate(
        flops=2 * B * text_dim * 2 * c_pad + 8 * B * c_pad,
        transcendentals=B * c_pad,
        bytes_accessed=(x.dtype.itemsize * B * text_dim
                        + w_packed.dtype.itemsize * text_dim * 2 * c_pad
                        + 4 * 2 * c_pad
                        + 4 * B * c_pad
                        + jnp.dtype(out_dtype).itemsize * B * 3 * c_pad),
    )

    packed = pl.pallas_call(
        ca_net_kernel,
        out_shape=jax.ShapeDtypeStruct((B, 3 * c_pad), out_dtype),
        grid_spec=pltpu.PrefetchScalarGridSpec(
            num_scalar_prefetch=0,
            grid=grid,
            in_specs=[
                pl.BlockSpec((tb, text_dim), lambda i: (i, 0)),      # x: streamed per tile
                pl.BlockSpec((text_dim, 2 * c_pad), lambda i: (0, 0)),  # W packed: resident
                pl.BlockSpec((1, 2 * c_pad), lambda i: (0, 0)),      # bias packed: resident
                pl.BlockSpec((tb, c_pad), lambda i: (i, 0)),         # eps: streamed per tile
            ],
            out_specs=pl.BlockSpec((tb, 3 * c_pad), lambda i: (i, 0)),
        ),
        compiler_params=pltpu.CompilerParams(
            dimension_semantics=("parallel",)),   # shard batch tiles across TCs (v7x)
        cost_estimate=cost,
    )(x, w_packed, b_packed, eps)

    # Cheap column slices back out of the lane-dense slab.
    c_code = packed[:, 0:c_dim]
    mu = packed[:, c_pad:c_pad + c_dim]
    logvar = packed[:, 2 * c_pad:2 * c_pad + c_dim]
    return c_code, mu, logvar


if __name__ == "__main__":
    # Small shapes consistent with CA_NET(text_dim, nef, cuda):
    B, TEXT_DIM, NEF = 8, 32, 16

    key = jax.random.PRNGKey(0)
    k_x, k_w, k_b, k_eps = jax.random.split(key, 4)

    # Deterministic parameter init (PyTorch Linear default: U(-1/sqrt(in), 1/sqrt(in)))
    bound = 1.0 / (TEXT_DIM ** 0.5)
    fc_weight = jax.random.uniform(k_w, (2 * NEF, TEXT_DIM), jnp.float32, -bound, bound)
    fc_bias = jax.random.uniform(k_b, (2 * NEF,), jnp.float32, -bound, bound)

    text_embedding = jax.random.normal(k_x, (B, TEXT_DIM), jnp.float32)
    eps = jax.random.normal(k_eps, (B, NEF), jnp.float32)

    # One-time parameter layout (transpose + mu/logvar packing + bf16 cast).
    w_packed, b_packed, c_dim, c_pad = prepare_ca_net_params(
        fc_weight, fc_bias, compute_dtype=jnp.bfloat16)

    c_code, mu, logvar = ca_net_forward(text_embedding, w_packed, b_packed, eps, c_dim)
    jax.block_until_ready((c_code, mu, logvar))

    # Reference 1: identical math to the kernel (bf16 matmul inputs, f32 accumulate).
    x_bf = text_embedding.astype(jnp.bfloat16).astype(jnp.float32)
    w_bf = fc_weight.astype(jnp.bfloat16).astype(jnp.float32)
    h_bf = jnp.maximum(x_bf @ w_bf.T + fc_bias, 0.0)
    mu_bf, lv_bf = h_bf[:, :NEF], h_bf[:, NEF:]
    c_bf = eps * jnp.exp(0.5 * lv_bf) + mu_bf
    assert jnp.allclose(mu, mu_bf, atol=1e-3, rtol=1e-3)
    assert jnp.allclose(logvar, lv_bf, atol=1e-3, rtol=1e-3)
    assert jnp.allclose(c_code, c_bf, atol=1e-3, rtol=1e-3)

    # Reference 2: full-f32 PyTorch-equivalent semantics (loose tolerance for bf16 streams).
    h_ref = jnp.maximum(text_embedding @ fc_weight.T + fc_bias, 0.0)
    mu_ref, lv_ref = h_ref[:, :NEF], h_ref[:, NEF:]
    c_ref = eps * jnp.exp(0.5 * lv_ref) + mu_ref
    assert jnp.allclose(mu, mu_ref, atol=5e-2)
    assert jnp.allclose(logvar, lv_ref, atol=5e-2)
    assert jnp.allclose(c_code, c_ref, atol=5e-2)

    print("KERNEL_OK")
</pallas_src>

<mosaic_0001>
module attributes {stable_mosaic.version = 11 : i64} {
  func.func @ca_net_kernel(%arg0: i32, %arg1: memref<8x32xbf16, #tpu.memory_space<vmem>>, %arg2: memref<32x256xbf16, #tpu.memory_space<vmem>>, %arg3: memref<1x256xf32, #tpu.memory_space<vmem>>, %arg4: memref<8x128xf32, #tpu.memory_space<vmem>>, %arg5: memref<8x384xf32, #tpu.memory_space<vmem>>) attributes {dimension_semantics = [#tpu.dimension_semantics<parallel>], iteration_bounds = array<i64: 1>, scalar_prefetch = 0 : i64, scratch_operands = 0 : i64, tpu.core_type = #tpu.core_type<tc>, window_params = [{transform_indices = @transform_0, window_bounds = array<i64: 8, 32>}, {pipeline_mode = #tpu.pipeline_mode<synchronous>, transform_indices = @transform_1, window_bounds = array<i64: 32, 256>}, {pipeline_mode = #tpu.pipeline_mode<synchronous>, transform_indices = @transform_2, window_bounds = array<i64: 1, 256>}, {transform_indices = @transform_3, window_bounds = array<i64: 8, 128>}, {transform_indices = @transform_4, window_bounds = array<i64: 8, 384>}]} {
    %c0 = arith.constant 0 : index
    %c0_0 = arith.constant 0 : index
    %0 = vector.load %arg1[%c0, %c0_0] : memref<8x32xbf16, #tpu.memory_space<vmem>>, vector<8x32xbf16>
    %c0_1 = arith.constant 0 : index
    %c0_2 = arith.constant 0 : index
    %1 = vector.load %arg2[%c0_1, %c0_2] : memref<32x256xbf16, #tpu.memory_space<vmem>>, vector<32x256xbf16>
    %cst = arith.constant dense<0.000000e+00> : vector<8x256xf32>
    %2 = tpu.matmul %0, %1, %cst {dimension_numbers = #tpu.dot_dimension_numbers<[1], [0], [0], [1], [0, 0, 1, 1], [], []>} : vector<8x32xbf16>, vector<32x256xbf16>, vector<8x256xf32> -> vector<8x256xf32>
    %c0_3 = arith.constant 0 : index
    %c0_4 = arith.constant 0 : index
    %3 = vector.load %arg3[%c0_3, %c0_4] : memref<1x256xf32, #tpu.memory_space<vmem>>, vector<1x256xf32>
    %4 = vector.broadcast %3 : vector<1x256xf32> to vector<8x256xf32>
    %5 = arith.addf %2, %4 : vector<8x256xf32>
    %cst_5 = arith.constant 0.000000e+00 : f32
    %6 = vector.broadcast %cst_5 : f32 to vector<8x256xf32>
    %7 = arith.maximumf %5, %6 : vector<8x256xf32>
    %8 = vector.extract_strided_slice %7 {offsets = [0, 0], sizes = [8, 128], strides = [1, 1]} : vector<8x256xf32> to vector<8x128xf32>
    %9 = vector.extract_strided_slice %7 {offsets = [0, 128], sizes = [8, 128], strides = [1, 1]} : vector<8x256xf32> to vector<8x128xf32>
    %cst_6 = arith.constant 5.000000e-01 : f32
    %10 = vector.broadcast %cst_6 : f32 to vector<8x128xf32>
    %11 = arith.mulf %10, %9 : vector<8x128xf32>
    %12 = math.exp %11 : vector<8x128xf32>
    %c0_7 = arith.constant 0 : index
    %c0_8 = arith.constant 0 : index
    %13 = vector.load %arg4[%c0_7, %c0_8] : memref<8x128xf32, #tpu.memory_space<vmem>>, vector<8x128xf32>
    %14 = arith.mulf %13, %12 : vector<8x128xf32>
    %15 = arith.addf %14, %8 : vector<8x128xf32>
    %c0_9 = arith.constant 0 : index
    %c0_10 = arith.constant 0 : index
    %16 = vector.load %arg5[%c0_9, %c0_10] : memref<8x384xf32, #tpu.memory_space<vmem>>, vector<8x128xf32>
    tpu.vector_store %arg5[%c0_9, %c0_10], %15 {strides = array<i32>} : memref<8x384xf32, #tpu.memory_space<vmem>>, vector<8x128xf32>,
    %c0_11 = arith.constant 0 : index
    %c128 = arith.constant 128 : index
    %17 = vector.load %arg5[%c0_11, %c128] : memref<8x384xf32, #tpu.memory_space<vmem>>, vector<8x128xf32>
    tpu.vector_store %arg5[%c0_11, %c128], %8 {strides = array<i32>} : memref<8x384xf32, #tpu.memory_space<vmem>>, vector<8x128xf32>,
    %c0_12 = arith.constant 0 : index
    %c256 = arith.constant 256 : index
    %18 = vector.load %arg5[%c0_12, %c256] : memref<8x384xf32, #tpu.memory_space<vmem>>, vector<8x128xf32>
    tpu.vector_store %arg5[%c0_12, %c256], %9 {strides = array<i32>} : memref<8x384xf32, #tpu.memory_space<vmem>>, vector<8x128xf32>,
    return
  }
  func.func @transform_0(%arg0: i32) -> (i32, i32) {
    %c0_i32 = arith.constant 0 : i32
    %c0_i32_0 = arith.constant 0 : i32
    return %arg0, %c0_i32 : i32, i32
  }
  func.func @transform_1(%arg0: i32) -> (i32, i32) {
    %c0_i32 = arith.constant 0 : i32
    %c0_i32_0 = arith.constant 0 : i32
    %c0_i32_1 = arith.constant 0 : i32
    return %c0_i32, %c0_i32_0 : i32, i32
  }
  func.func @transform_2(%arg0: i32) -> (i32, i32) {
    %c0_i32 = arith.constant 0 : i32
    %c0_i32_0 = arith.constant 0 : i32
    %c0_i32_1 = arith.constant 0 : i32
    return %c0_i32, %c0_i32_0 : i32, i32
  }
  func.func @transform_3(%arg0: i32) -> (i32, i32) {
    %c0_i32 = arith.constant 0 : i32
    %c0_i32_0 = arith.constant 0 : i32
    return %arg0, %c0_i32 : i32, i32
  }
  func.func @transform_4(%arg0: i32) -> (i32, i32) {
    %c0_i32 = arith.constant 0 : i32
    %c0_i32_0 = arith.constant 0 : i32
    return %arg0, %c0_i32 : i32, i32
  }
}

</mosaic_0001>

<llo_original>
// kernel: tpu_custom_call.1
$region0: #{tpu_custom_call.1}
  #allocation0 [shape = 'u32[]', space=smem, size = 0x4, offset = 0x4, fixed_abs, tag = 'smem constant byte address 0x4 - core index']
  #allocation1 [shape = 'u32[144,128]{1,0:T(1,128)}', space=vmem, size = 0x12000, scoped, tag = 'internal scratch']
  %s0 = inlined_call_operand.hbm [shape: bf16[8,32], index: 0, kind: input, shape index: {}]
  %s1 = inlined_call_operand.hbm [shape: bf16[32,256], index: 1, kind: input, shape index: {}]
  %s2 = inlined_call_operand.vmem [shape: f32[1,256], index: 2, kind: input, shape index: {}]
  %s3 = inlined_call_operand.vmem [shape: f32[8,128], index: 3, kind: input, shape index: {}]
  %s4 = inlined_call_operand.hbm [shape: f32[8,384], index: 4, kind: output, shape index: {}]
  %s5 = sld [smem:[#allocation0]]
  $region34: #{tpu_custom_call.1} parent=0
    _
  %s7 = ssub.s32 1, %s5
  %s8 = scalar_select 0, %s7, %s5
  $region1: #{tpu_custom_call.1} parent=0
    #allocation2 [shape = 'u8[2048]{0}', space=vmem, size = 0x800, scoped, tag = 'input window, operand 0, single buffered']
    #allocation3 [shape = 's32[1]{0}', space=sflag, size = 0x4, scoped, tag = 'scoped memory for tpu_custom_call.1']
    #allocation4 [shape = 's32[1]{0}', space=sflag, size = 0x4, scoped, tag = 'scoped memory for tpu_custom_call.1']
    #allocation5 [shape = 'u8[16384]{0}', space=vmem, size = 0x4000, scoped, tag = 'input window, operand 1, single buffered']
    #allocation6 [shape = 's32[1]{0}', space=sflag, size = 0x4, scoped, tag = 'scoped memory for tpu_custom_call.1']
    #allocation7 [shape = 'u8[12288]{0}', space=vmem, size = 0x3000, scoped, tag = 'output window, operand 0, single buffered']
    %9 = vsyncpa [#allocation3], 0
    %10 = vsyncpa [#allocation6], 0
    %11 = vsyncpa [#allocation4], 0
    // Predicated region
    $region2: #{tpu_custom_call.1} parent=1 // pred_check
      _
    $region3: #{tpu_custom_call.1} parent=1 // pred_check_branch
      %13 = sbr.rel (0) target = $region5
    $region4: #{tpu_custom_call.1} parent=1 // pred_region
      %s15 = ssub.s32 64, 64
      %16 = vsyncadd [#allocation3], %s15
      %s18 = sshll.u32 [#allocation2], 4
      %s19 = int_to_ptr.vmem [resolvable:$true] %s18
      %21 = dma.hbm_to_vmem [thread:$0]  %s0, 64, %s19, [#allocation3]
    $region5: #{tpu_custom_call.1} parent=1 // pred_fallthru
      _
    // Predicated region
    $region6: #{tpu_custom_call.1} parent=1 // pred_check
      _
    $region7: #{tpu_custom_call.1} parent=1 // pred_check_branch
      %23 = sbr.rel (0) target = $region9
    $region8: #{tpu_custom_call.1} parent=1 // pred_region
      %s25 = ssub.s32 512, 512
      %26 = vsyncadd [#allocation6], %s25
      %s27 = sshll.u32 [#allocation5], 4
      %s28 = int_to_ptr.vmem [resolvable:$true] %s27
      %33 = dma.hbm_to_vmem [thread:$0]  %s1, 512, %s28, [#allocation6], 128, 128, 8
    $region9: #{tpu_custom_call.1} parent=1 // pred_fallthru
      _
    // Predicated region
    $region10: #{tpu_custom_call.1} parent=1 // pred_check
      _
    $region11: #{tpu_custom_call.1} parent=1 // pred_check_branch
      %35 = sbr.rel (0) target = $region13
    $region12: #{tpu_custom_call.1} parent=1 // pred_region
      _
    $region13: #{tpu_custom_call.1} parent=1 // pred_fallthru
      _
    // Predicated region
    $region14: #{tpu_custom_call.1} parent=1 // pred_check
      _
    $region15: #{tpu_custom_call.1} parent=1 // pred_check_branch
      %37 = sbr.rel (0) target = $region17
    $region16: #{tpu_custom_call.1} parent=1 // pred_region
      _
    $region17: #{tpu_custom_call.1} parent=1 // pred_fallthru
      _
    // Predicated region
    $region18: #{tpu_custom_call.1} parent=1 // pred_check
      _
    $region19: #{tpu_custom_call.1} parent=1 // pred_check_branch
      %39 = sbr.rel (0) target = $region21
    $region20: #{tpu_custom_call.1} parent=1 // pred_region
      %40 = dma.done [#allocation3], 64
    $region21: #{tpu_custom_call.1} parent=1 // pred_fallthru
      _
    // Predicated region
    $region22: #{tpu_custom_call.1} parent=1 // pred_check
      _
    $region23: #{tpu_custom_call.1} parent=1 // pred_check_branch
      %42 = sbr.rel (0) target = $region25
    $region24: #{tpu_custom_call.1} parent=1 // pred_region
      %43 = dma.done [#allocation6], 512
    $region25: #{tpu_custom_call.1} parent=1 // pred_fallthru
      _
    %v45 = vld [vmem:[#allocation2] sm:$0xf]
    %v46 = vld [vmem:[#allocation5] sm:$0xff]
    %v47 = vld [vmem:[#allocation5 + $0x8] sm:$0xff]
    %v48 = vld [vmem:[#allocation5 + $0x10] sm:$0xff]
    %v49 = vld [vmem:[#allocation5 + $0x18] sm:$0xff]
    %v50 = vld [vmem:[%s2] sm:$0x3]
    %v52 = vlaneseq
    %v53 = vshrl.u32 %v52, 7
    %v54 = vsub.s32 0, %v53
    %v55 = vrot.slane %v50, %v54
    %v56 = vlaneseq
    %v57 = vshrl.u32 %v56, 7
    %v58 = vsub.s32 1, %v57
    %v59 = vrot.slane %v50, %v58
    %v66 = vunpack.c.l.b16 %v46
    %v67 = vunpack.c.h.b16 %v46
    %v68 = vunpack.c.l.b16 %v47
    %v69 = vunpack.c.h.b16 %v47
    %v70 = vunpack.c.l.b16 %v48
    %v71 = vunpack.c.h.b16 %v48
    %v72 = vunpack.c.l.b16 %v49
    %v73 = vunpack.c.h.b16 %v49
    %v74 = vpack.c.b16 %v68, %v66
    %v75 = vpack.c.b16 %v69, %v67
    %v76 = vpack.c.b16 %v72, %v70
    %v77 = vpack.c.b16 %v73, %v71
    %vm82 = vcmask 261120
    %v84 = vsel %vm82, %v45, 0
    %86 = vmatprep.subr.bf16.mxu0 %v75
    %87 = vmatpush1.bf16.msra.mxu0 %v74
    %88 = vmatprep.subr.bf16.mxu0 %v77
    %89 = vmatpush1.bf16.msra.mxu0 %v76
    %90 = vmatprep.subr.bf16.mxu0 0
    %91 = vmatpush1.bf16.msra.mxu0 0
    %92 = vmatprep.subr.bf16.mxu0 0
    %93 = vmatpush1.bf16.msra.mxu0 0
    %94 = vmatprep.subr.bf16.mxu0 0
    %95 = vmatpush1.bf16.msra.mxu0 0
    %96 = vmatprep.subr.bf16.mxu0 0
    %97 = vmatpush1.bf16.msra.mxu0 0
    %98 = vmatprep.subr.bf16.mxu0 0
    %99 = vmatpush1.bf16.msra.mxu0 0
    %100 = vmatprep.subr.bf16.mxu0 0
    %101 = vmatpush1.bf16.msra.mxu0 0
    %102 = vmatprep.subr.bf16.mxu0 0
    %103 = vmatpush1.bf16.msra.mxu0 0
    %104 = vmatprep.subr.bf16.mxu0 0
    %105 = vmatpush1.bf16.msra.mxu0 0
    %106 = vmatprep.subr.bf16.mxu0 0
    %107 = vmatpush1.bf16.msra.mxu0 0
    %108 = vmatprep.subr.bf16.mxu0 0
    %109 = vmatpush1.bf16.msra.mxu0 0
    %110 = vmatprep.subr.bf16.mxu0 0
    %111 = vmatpush1.bf16.msra.mxu0 0
    %112 = vmatprep.subr.bf16.mxu0 0
    %113 = vmatpush1.bf16.msra.mxu0 0
    %114 = vmatprep.subr.bf16.mxu0 0
    %115 = vmatpush1.bf16.msra.mxu0 0
    %116 = vmatprep.subr.bf16.mxu0 0
    %117 = vmatpush1.bf16.msra.mxu0 0
    %118 = vmatprep.mubr.bf16.mxu0 0
    %119 = vmatmul.mubr.bf16.gmra.mrb[0].mxu0 %v84
    %v120 = vpop.f32.mrb[0].mxu0
    %v121 = vadd.f32 %v55, %v120
    %v122 = vpop.f32.mrb[0].mxu0
    %v123 = vadd.f32 %v59, %v122
    %v124 = vpop.f32.mrb[0].mxu0
    %v125 = vpop.f32.mrb[0].mxu0
    %126 = vdwg.mxu0
    %v127 = vmax.f32 %v121, 0.0
    %v128 = vmax.f32 %v123, 0.0
    %v129 = vmul.f32 %v128, 0.5
    %v130 = vmul.f32 %v129, 1.442695
    %v131 = vpow.pop %v130
    %v132 = vld [vmem:[%s3] sm:$0xff]
    %v133 = vmul.f32 %v132, %v131
    %v134 = vadd.f32 %v133, %v127
    %135 = vst [vmem:[#allocation7] sm:$0xff] %v134
    %136 = vst [vmem:[#allocation7 + $0x8] sm:$0xff] %v127
    %137 = vst [vmem:[#allocation7 + $0x10] sm:$0xff] %v128
    // Predicated region
    $region26: #{tpu_custom_call.1} parent=1 // pred_check
      _
    $region27: #{tpu_custom_call.1} parent=1 // pred_check_branch
      %139 = sbr.rel (0) target = $region29
    $region28: #{tpu_custom_call.1} parent=1 // pred_region
      %s141 = ssub.s32 384, 384
      %142 = vsyncadd [#allocation4], %s141
      %s144 = sshll.u32 [#allocation7], 4
      %s145 = int_to_ptr.vmem [resolvable:$true] %s144
      %147 = dma.vmem_to_hbm [thread:$0]  %s145, 384, %s4, [#allocation4]
    $region29: #{tpu_custom_call.1} parent=1 // pred_fallthru
      _
    // Predicated region
    $region30: #{tpu_custom_call.1} parent=1 // pred_check
      _
    $region31: #{tpu_custom_call.1} parent=1 // pred_check_branch
      %149 = sbr.rel (0) target = $region33
    $region32: #{tpu_custom_call.1} parent=1 // pred_region
      %150 = dma.done [#allocation4], 384
    $region33: #{tpu_custom_call.1} parent=1 // pred_fallthru
      _
    %151 = vsyncpa [#allocation3], 1
    %152 = vsyncpa [#allocation6], 1
    %153 = vsyncpa [#allocation4], 1

</llo_original>
